<compile_context>
chip_gen: v7x
topology: tpu7x:2x2x1
jax: 0.10.0
libtpu: 0.0.40
codegen_flags: <defaults>
</compile_context>

<pallas_src>
import functools

import jax
import jax.numpy as jnp
from jax.experimental import pallas as pl
from jax.experimental.pallas import tpu as pltpu


def g1013_kernel(x_ref, w_ref, o_ref, *, threshold, factor_f, use_mxu):
    x = x_ref[...].astype(jnp.float32)                         # (3, TM), in-kernel upcast
    # Gate: (g - r > thr) ? fp16(factor) : 1.0, applied to all three input channels
    # (matches torch's W·(m⊙x) ordering exactly).
    m = jnp.where(x[1:2, :] - x[0:1, :] > threshold,
                  jnp.float32(factor_f), jnp.float32(1.0))      # (1, TM)
    y = x * m                                                   # (3, TM)

    w = w_ref[...]                                              # (C2, 4): [wr|wg|wb|bn_bias]
    bias = w[:, 3:4]                                            # (C2, 1)
    if use_mxu:
        # Large C2: offload the depth-3 contraction to the (otherwise idle) MXU.
        z = jnp.dot(w[:, 0:3], y,
                    preferred_element_type=jnp.float32,
                    precision=jax.lax.Precision.HIGHEST) + bias
    else:
        # Small C2: three broadcast FMAs on the VPU (kernel is HBM-bound anyway).
        z = (w[:, 0:1] * y[0:1, :]
             + w[:, 1:2] * y[1:2, :]
             + w[:, 2:3] * y[2:3, :]
             + bias)                                            # (C2, TM)

    # SiLU with an EUP-friendly sigmoid: sigmoid(z) = 0.5*tanh(0.5*z) + 0.5.
    o_ref[...] = (z * (0.5 * jnp.tanh(0.5 * z) + 0.5)).astype(o_ref.dtype)


def _select_tm(HW, N, C1, C2, in_bytes, out_bytes, bytes_target=3 << 20):
    """Lane-dense pixel tile: a large multiple of 128 (or the full spatial extent)."""
    if HW <= 512:
        return HW
    per_pixel = in_bytes * C1 + out_bytes * C2
    tm = int((bytes_target // per_pixel) // 128) * 128
    tm = max(tm, 512)
    if tm >= HW:
        tm = HW
    else:
        # Prefer a tile that divides HW exactly (keeps the last-tile store unmasked).
        for cand in range(tm, max(tm // 2, 511), -128):
            if HW % cand == 0:
                tm = cand
                break
    # v7x megacore: guarantee at least 2 grid steps so both TensorCores get work.
    if N * pl.cdiv(HW, tm) < 2:
        tm = ((pl.cdiv(HW, 2) + 127) // 128) * 128
    return tm


def g1013_forward(x_nchw, weight, gamma, beta, running_mean, running_var,
                  threshold=0.0392, factor=1.3, eps=1e-5,
                  out_dtype=None, use_mxu=None, tile_bytes_target=3 << 20):
    N, C1, H, W = x_nchw.shape
    assert C1 == 3, "G1013 operates on RGB input (c1 == 3)"
    C2 = weight.shape[0]
    HW = H * W
    out_dtype = x_nchw.dtype if out_dtype is None else out_dtype
    if use_mxu is None:
        use_mxu = C2 >= 64          # VALU slot only binds for large C2 (mainly v7x)

    # Fold BN (eval mode) scale into the conv weight rows; keep the bias separate.
    inv_std = 1.0 / jnp.sqrt(running_var.astype(jnp.float32) + eps)
    bn_scale = gamma.astype(jnp.float32) * inv_std                                # (C2,)
    bn_bias = beta.astype(jnp.float32) - running_mean.astype(jnp.float32) * bn_scale
    w2d = weight.reshape(C2, C1).astype(jnp.float32) * bn_scale[:, None]          # (C2, 3)
    wpack = jnp.concatenate([w2d, bn_bias[:, None]], axis=1)                      # (C2, 4)

    # Channel-major: NCHW -> (N, C1, H*W) is a free reshape (no transpose, no cast).
    x3d = x_nchw.reshape(N, C1, HW)

    in_bytes = x3d.dtype.itemsize
    out_bytes = jnp.dtype(out_dtype).itemsize
    tm = _select_tm(HW, N, C1, C2, in_bytes, out_bytes, tile_bytes_target)
    grid = (N, pl.cdiv(HW, tm))

    # Reproduce torch's half-precision factor exactly (1.3 -> fp16 -> f32).
    factor_f = float(jnp.float16(factor))

    kernel = functools.partial(g1013_kernel,
                               threshold=float(threshold),
                               factor_f=factor_f,
                               use_mxu=bool(use_mxu))

    # VMEM budget: double-buffered input + output tiles, clamped to the chip's VMEM.
    try:
        vmem_cap = int(pltpu.get_tpu_info().vmem_capacity_bytes)
    except Exception:
        vmem_cap = 64 << 20                           # conservative (v7x per-TC VMEM)
    vmem_needed = 2 * tm * (in_bytes * C1 + out_bytes * C2) + (2 << 20)
    vmem_limit = None
    if vmem_needed > (16 << 20):
        vmem_limit = int(min(max(vmem_needed, 32 << 20), vmem_cap - (8 << 20)))

    out3d = pl.pallas_call(
        kernel,
        out_shape=jax.ShapeDtypeStruct((N, C2, HW), out_dtype),
        grid_spec=pltpu.PrefetchScalarGridSpec(
            num_scalar_prefetch=0,
            grid=grid,
            in_specs=[
                pl.BlockSpec((None, C1, tm), lambda n, i: (n, 0, i)),   # pixel tile
                pl.BlockSpec((C2, 4), lambda n, i: (0, 0)),             # folded w + bias
            ],
            out_specs=pl.BlockSpec((None, C2, tm), lambda n, i: (n, 0, i)),
        ),
        compiler_params=pltpu.CompilerParams(
            dimension_semantics=("parallel", "parallel"),
            vmem_limit_bytes=vmem_limit,
        ),
    )(x3d, wpack)

    # Free reshape back to NCHW (no transpose).
    return out3d.reshape(N, C2, H, W)


def g1013_reference(x_nchw, weight, gamma, beta, running_mean, running_var,
                    threshold=0.0392, factor=1.3, eps=1e-5):
    r = x_nchw[:, 0, :, :]
    g = x_nchw[:, 1, :, :]
    diff = g - r
    m = jnp.where(diff > threshold, jnp.float32(jnp.float16(factor)), jnp.float32(1.0))
    y = x_nchw * m[:, None, :, :]
    conv = jnp.einsum('nchw,oc->nohw', y,
                      weight.reshape(weight.shape[0], weight.shape[1]))
    inv_std = 1.0 / jnp.sqrt(running_var + eps)
    z = (conv - running_mean[None, :, None, None]) * (gamma * inv_std)[None, :, None, None] \
        + beta[None, :, None, None]
    return z * jax.nn.sigmoid(z)


if __name__ == "__main__":
    key = jax.random.PRNGKey(0)
    k_x, k_w, k_g, k_b, k_m, k_v = jax.random.split(key, 6)

    N, C1, C2, H, W = 2, 3, 16, 16, 16   # module operates on RGB input -> c1 = 3

    x = jax.random.normal(k_x, (N, C1, H, W), dtype=jnp.float32) * 0.5
    weight = jax.random.normal(k_w, (C2, C1, 1, 1), dtype=jnp.float32) * 0.2
    gamma = 1.0 + 0.1 * jax.random.normal(k_g, (C2,), dtype=jnp.float32)
    beta = 0.1 * jax.random.normal(k_b, (C2,), dtype=jnp.float32)
    running_mean = 0.05 * jax.random.normal(k_m, (C2,), dtype=jnp.float32)
    running_var = jnp.abs(jax.random.normal(k_v, (C2,), dtype=jnp.float32)) + 0.5

    ref = g1013_reference(x, weight, gamma, beta, running_mean, running_var)

    # Default (VPU broadcast-FMA) path.
    out = jax.block_until_ready(
        g1013_forward(x, weight, gamma, beta, running_mean, running_var))
    assert out.shape == (N, C2, H, W)
    assert jnp.allclose(out, ref, rtol=1e-4, atol=1e-4), "VPU path mismatch vs reference"

    # MXU path (selected automatically for large C2) — validated here at small shapes.
    out_mxu = jax.block_until_ready(
        g1013_forward(x, weight, gamma, beta, running_mean, running_var, use_mxu=True))
    assert jnp.allclose(out_mxu, ref, rtol=1e-3, atol=1e-3), "MXU path mismatch vs reference"

    print("KERNEL_OK")
</pallas_src>

<mosaic_0001>
module attributes {stable_mosaic.version = 11 : i64} {
  func.func @g1013_kernel(%arg0: i32, %arg1: i32, %arg2: memref<1x3x256xf32, #tpu.memory_space<vmem>>, %arg3: memref<16x4xf32, #tpu.memory_space<vmem>>, %arg4: memref<1x16x256xf32, #tpu.memory_space<vmem>>) attributes {dimension_semantics = [#tpu.dimension_semantics<parallel>, #tpu.dimension_semantics<parallel>], iteration_bounds = array<i64: 2, 1>, scalar_prefetch = 0 : i64, scratch_operands = 0 : i64, tpu.core_type = #tpu.core_type<tc>, window_params = [{transform_indices = @transform_0, window_bounds = array<i64: 1, 3, 256>}, {pipeline_mode = #tpu.pipeline_mode<synchronous>, transform_indices = @transform_1, window_bounds = array<i64: 16, 4>}, {transform_indices = @transform_2, window_bounds = array<i64: 1, 16, 256>}]} {
    %c0 = arith.constant 0 : index
    %c0_0 = arith.constant 0 : index
    %c0_1 = arith.constant 0 : index
    %0 = vector.load %arg2[%c0, %c0_0, %c0_1] : memref<1x3x256xf32, #tpu.memory_space<vmem>>, vector<1x3x256xf32>
    %1 = vector.shape_cast %0 : vector<1x3x256xf32> to vector<3x256xf32>
    %2 = vector.extract_strided_slice %1 {offsets = [1, 0], sizes = [1, 256], strides = [1, 1]} : vector<3x256xf32> to vector<1x256xf32>
    %3 = vector.extract_strided_slice %1 {offsets = [0, 0], sizes = [1, 256], strides = [1, 1]} : vector<3x256xf32> to vector<1x256xf32>
    %4 = arith.subf %2, %3 : vector<1x256xf32>
    %cst = arith.constant 3.920000e-02 : f32
    %5 = vector.broadcast %cst : f32 to vector<1x256xf32>
    %6 = arith.cmpf ogt, %4, %5 : vector<1x256xf32>
    %cst_2 = arith.constant 1.29980469 : f32
    %cst_3 = arith.constant 1.000000e+00 : f32
    %7 = vector.broadcast %cst_2 : f32 to vector<1x256xf32>
    %8 = vector.broadcast %cst_3 : f32 to vector<1x256xf32>
    %9 = arith.select %6, %7, %8 : vector<1x256xi1>, vector<1x256xf32>
    %10 = vector.broadcast %9 : vector<1x256xf32> to vector<3x256xf32>
    %11 = arith.mulf %1, %10 : vector<3x256xf32>
    %c0_4 = arith.constant 0 : index
    %c0_5 = arith.constant 0 : index
    %12 = vector.load %arg3[%c0_4, %c0_5] : memref<16x4xf32, #tpu.memory_space<vmem>>, vector<16x4xf32>
    %13 = vector.extract_strided_slice %12 {offsets = [0, 3], sizes = [16, 1], strides = [1, 1]} : vector<16x4xf32> to vector<16x1xf32>
    %14 = vector.extract_strided_slice %12 {offsets = [0, 0], sizes = [16, 1], strides = [1, 1]} : vector<16x4xf32> to vector<16x1xf32>
    %15 = vector.extract_strided_slice %11 {offsets = [0, 0], sizes = [1, 256], strides = [1, 1]} : vector<3x256xf32> to vector<1x256xf32>
    %16 = vector.broadcast %14 : vector<16x1xf32> to vector<16x256xf32>
    %17 = vector.broadcast %15 : vector<1x256xf32> to vector<16x256xf32>
    %18 = arith.mulf %16, %17 : vector<16x256xf32>
    %19 = vector.extract_strided_slice %12 {offsets = [0, 1], sizes = [16, 1], strides = [1, 1]} : vector<16x4xf32> to vector<16x1xf32>
    %20 = vector.extract_strided_slice %11 {offsets = [1, 0], sizes = [1, 256], strides = [1, 1]} : vector<3x256xf32> to vector<1x256xf32>
    %21 = vector.broadcast %19 : vector<16x1xf32> to vector<16x256xf32>
    %22 = vector.broadcast %20 : vector<1x256xf32> to vector<16x256xf32>
    %23 = arith.mulf %21, %22 : vector<16x256xf32>
    %24 = arith.addf %18, %23 : vector<16x256xf32>
    %25 = vector.extract_strided_slice %12 {offsets = [0, 2], sizes = [16, 1], strides = [1, 1]} : vector<16x4xf32> to vector<16x1xf32>
    %26 = vector.extract_strided_slice %11 {offsets = [2, 0], sizes = [1, 256], strides = [1, 1]} : vector<3x256xf32> to vector<1x256xf32>
    %27 = vector.broadcast %25 : vector<16x1xf32> to vector<16x256xf32>
    %28 = vector.broadcast %26 : vector<1x256xf32> to vector<16x256xf32>
    %29 = arith.mulf %27, %28 : vector<16x256xf32>
    %30 = arith.addf %24, %29 : vector<16x256xf32>
    %31 = vector.broadcast %13 : vector<16x1xf32> to vector<16x256xf32>
    %32 = arith.addf %30, %31 : vector<16x256xf32>
    %cst_6 = arith.constant 5.000000e-01 : f32
    %33 = vector.broadcast %cst_6 : f32 to vector<16x256xf32>
    %34 = arith.mulf %33, %32 : vector<16x256xf32>
    %35 = math.tanh %34 : vector<16x256xf32>
    %cst_7 = arith.constant 5.000000e-01 : f32
    %36 = vector.broadcast %cst_7 : f32 to vector<16x256xf32>
    %37 = arith.mulf %36, %35 : vector<16x256xf32>
    %cst_8 = arith.constant 5.000000e-01 : f32
    %38 = vector.broadcast %cst_8 : f32 to vector<16x256xf32>
    %39 = arith.addf %37, %38 : vector<16x256xf32>
    %40 = arith.mulf %32, %39 : vector<16x256xf32>
    %c0_9 = arith.constant 0 : index
    %c0_10 = arith.constant 0 : index
    %c0_11 = arith.constant 0 : index
    %41 = vector.load %arg4[%c0_9, %c0_10, %c0_11] : memref<1x16x256xf32, #tpu.memory_space<vmem>>, vector<1x16x256xf32>
    %42 = vector.shape_cast %41 : vector<1x16x256xf32> to vector<16x256xf32>
    %43 = vector.shape_cast %40 : vector<16x256xf32> to vector<1x16x256xf32>
    tpu.vector_store %arg4[%c0_9, %c0_10, %c0_11], %43 {strides = array<i32>} : memref<1x16x256xf32, #tpu.memory_space<vmem>>, vector<1x16x256xf32>,
    return
  }
  func.func @transform_0(%arg0: i32, %arg1: i32) -> (i32, i32, i32) {
    %c0_i32 = arith.constant 0 : i32
    %c0_i32_0 = arith.constant 0 : i32
    return %arg0, %c0_i32, %arg1 : i32, i32, i32
  }
  func.func @transform_1(%arg0: i32, %arg1: i32) -> (i32, i32) {
    %c0_i32 = arith.constant 0 : i32
    %c0_i32_0 = arith.constant 0 : i32
    %c0_i32_1 = arith.constant 0 : i32
    return %c0_i32, %c0_i32_0 : i32, i32
  }
  func.func @transform_2(%arg0: i32, %arg1: i32) -> (i32, i32, i32) {
    %c0_i32 = arith.constant 0 : i32
    %c0_i32_0 = arith.constant 0 : i32
    return %arg0, %c0_i32, %arg1 : i32, i32, i32
  }
}

</mosaic_0001>

<llo_original>
// kernel: tpu_custom_call.1
$region0: #{tpu_custom_call.1}
  #allocation0 [shape = 'u32[]', space=smem, size = 0x4, offset = 0x4, fixed_abs, tag = 'smem constant byte address 0x4 - core index']
  #allocation1 [shape = 'u32[144,128]{1,0:T(1,128)}', space=vmem, size = 0x12000, scoped, tag = 'internal scratch']
  %s0 = inlined_call_operand.vmem [shape: f32[2,3,256], index: 0, kind: input, shape index: {}]
  %s1 = inlined_call_operand.vmem [shape: f32[16,4], index: 1, kind: input, shape index: {}]
  %s2 = inlined_call_operand.hbm [shape: f32[2,16,256], index: 2, kind: output, shape index: {}]
  %s3 = sld [smem:[#allocation0]]
  $region41: #{tpu_custom_call.1} parent=0
    _
  %s5 = ssub.s32 1, %s3
  %s6 = scalar_select 0, %s5, %s3
  $region1: #{tpu_custom_call.1} parent=0
    #allocation2 [shape = 'u8[32768]{0}', space=vmem, size = 0x8000, scoped, tag = 'output window, operand 0']
    #allocation3 [shape = 's32[2]{0}', space=sflag, size = 0x8, scoped, tag = 'scoped memory for tpu_custom_call.1']
    %7 = vsyncpa [#allocation3], 0
    %s8 = scalar_lea.sflag [#allocation3], 1
    %9 = vsyncpa %s8, 0
    loop: start=0, step=1, limit=4
    $region2: #{tpu_custom_call.1} parent=1 // loop_pre_header
      _
    $region3: #{tpu_custom_call.1} parent=1 // loop_header
      %s11 = sphi 0, %s15
      %p12 = scmp.ge.s32.totalorder %s11, 4
      %s18 = sphi 0, %s30
      %s19 = sphi 0, %s26
      %s20 = sphi 0, %s18
      %s21 = sphi 0, %s19
      %s22 = sphi 0, %s20
      %s23 = sphi 0, %s21
      %s35 = sphi 0, %s37
      %s38 = sphi 0, %s35
      %s39 = sphi 0, %s38
      %s55 = sphi 0, %s39
      %s59 = sphi 0, %s59
      %s61 = sphi 0, %s59
      %s62 = sphi 0, %s61
      %s76 = sphi 0, %s62
      %s84 = sphi 0, %s86
      %s87 = sphi 0, %s84
      %s88 = sphi 0, %s87
      %s104 = sphi 0, %s88
    $region4: #{tpu_custom_call.1} parent=1 // loop_header_branch
      %14 = sbr.rel (%p12) target = $region8
    $region5: #{tpu_custom_call.1} parent=1 // loop_body
      %s16 = ssub.s32 %s11, 1
      %s17 = ssub.s32 %s11, 2
      %s24 = sadd.s32 1, %s19
      %p25 = scmp.ge.s32.totalorder %s24, 1
      %s26 = scalar_select %p25, 0, %s24
      %s27 = sadd.s32 1, %s18
      %s28 = scalar_select %p25, %s27, %s18
      %p29 = scmp.ge.s32.totalorder %s28, 2
      %s30 = scalar_select %p29, 0, %s28
      %s31 = ssub.s32 %s18, %s30
      %s32 = ssub.s32 %s19, %s26
      %s33 = sor.u32 %s31, %s32
      %p34 = scmp.eq.s32.totalorder %s33, 0
      %s36 = sadd.s32 %s35, 1
      %s37 = scalar_select %p34, %s35, %s36
      %p40 = pneg %p34
      %p41 = scmp.eq.s32.totalorder %s11, 1
      %p42 = por %p40, %p41
      %p43 = scmp.ne.s32.totalorder %s35, %s38
      %p44 = scmp.eq.s32.totalorder %s11, 0
      %p45 = por %p43, %p44
      %p46 = scmp.ne.s32.totalorder %s35, %s38
      %p47 = scmp.eq.s32.totalorder %s16, 1
      %p48 = por %p46, %p47
      %p49 = scmp.ne.s32.totalorder %s38, %s39
      %p50 = scmp.eq.s32.totalorder %s16, 0
      %p51 = por %p49, %p50
      %p52 = scmp.ne.s32.totalorder %s38, %s39
      %p53 = scmp.eq.s32.totalorder %s17, 1
      %p54 = por %p52, %p53
      %p56 = scmp.ne.s32.totalorder %s39, %s55
      %p57 = scmp.eq.s32.totalorder %s17, 0
      %p58 = por %p56, %p57
      %s60 = sadd.s32 %s59, 1
      %p63 = scmp.eq.s32.totalorder %s11, 1
      %p64 = scmp.ne.s32.totalorder %s59, %s61
      %p65 = scmp.eq.s32.totalorder %s11, 0
      %p66 = por %p64, %p65
      %p67 = scmp.ne.s32.totalorder %s59, %s61
      %p68 = scmp.eq.s32.totalorder %s16, 1
      %p69 = por %p67, %p68
      %p70 = scmp.ne.s32.totalorder %s61, %s62
      %p71 = scmp.eq.s32.totalorder %s16, 0
      %p72 = por %p70, %p71
      %p73 = scmp.ne.s32.totalorder %s61, %s62
      %p74 = scmp.eq.s32.totalorder %s17, 1
      %p75 = por %p73, %p74
      %p77 = scmp.ne.s32.totalorder %s62, %s76
      %p78 = scmp.eq.s32.totalorder %s17, 0
      %p79 = por %p77, %p78
      %s80 = ssub.s32 %s18, %s30
      %s81 = ssub.s32 %s19, %s26
      %s82 = sor.u32 %s80, %s81
      %p83 = scmp.eq.s32.totalorder %s82, 0
      %s85 = sadd.s32 %s84, 1
      %s86 = scalar_select %p83, %s84, %s85
      %p89 = pneg %p83
      %p90 = scmp.eq.s32.totalorder %s11, 1
      %p91 = por %p89, %p90
      %p92 = scmp.ne.s32.totalorder %s84, %s87
      %p93 = scmp.eq.s32.totalorder %s11, 0
      %p94 = por %p92, %p93
      %p95 = scmp.ne.s32.totalorder %s84, %s87
      %p96 = scmp.eq.s32.totalorder %s16, 1
      %p97 = por %p95, %p96
      %p98 = scmp.ne.s32.totalorder %s87, %s88
      %p99 = scmp.eq.s32.totalorder %s16, 0
      %p100 = por %p98, %p99
      %p101 = scmp.ne.s32.totalorder %s87, %s88
      %p102 = scmp.eq.s32.totalorder %s17, 1
      %p103 = por %p101, %p102
      %p105 = scmp.ne.s32.totalorder %s88, %s104
      %p106 = scmp.eq.s32.totalorder %s17, 0
      %p107 = por %p105, %p106
      %p108 = scmp.le.s32.totalorder 1, %s11
      %p109 = scmp.lt.s32.totalorder %s11, 3
      %p110 = pnand %p108, %p109
      %p111 = pneg %p110
      // Predicated region
      $region9: #{tpu_custom_call.1} parent=5 // pred_check
        _
      $region10: #{tpu_custom_call.1} parent=5 // pred_check_branch
        %113 = sbr.rel (%p110) target = $region12
      $region11: #{tpu_custom_call.1} parent=5 // pred_region
        %s114 = ssub.s32 %s11, 1
        // Predicated region
        $region13: #{tpu_custom_call.1} parent=11 // pred_check
          %p115 = pneg %p72
        $region14: #{tpu_custom_call.1} parent=11 // pred_check_branch
          %117 = sbr.rel (%p115) target = $region16
        $region15: #{tpu_custom_call.1} parent=11 // pred_region
          _
        $region16: #{tpu_custom_call.1} parent=11 // pred_fallthru
          _
      $region12: #{tpu_custom_call.1} parent=5 // pred_fallthru
        _
      %p118 = scmp.lt.s32.totalorder %s11, 2
      // Predicated region
      $region17: #{tpu_custom_call.1} parent=5 // pred_check
        %p119 = pneg %p118
      $region18: #{tpu_custom_call.1} parent=5 // pred_check_branch
        %121 = sbr.rel (%p119) target = $region20
      $region19: #{tpu_custom_call.1} parent=5 // pred_region
        // Predicated region
        $region21: #{tpu_custom_call.1} parent=19 // pred_check
          %p122 = pneg %p45
        $region22: #{tpu_custom_call.1} parent=19 // pred_check_branch
          %124 = sbr.rel (%p122) target = $region24
        $region23: #{tpu_custom_call.1} parent=19 // pred_region
          %s125 = smul.u32 2, %s19
          %p126 = scmp.lt.s32.totalorder %s18, 1
          %s127 = scalar_select %p126, %s18, 1
          %p128 = scmp.lt.s32.totalorder %s125, 1
          %s129 = scalar_select %p128, %s125, 1
          %s130 = smul.addr %s127, 2
          %s131 = sadd.s32 %s129, %s130
          %s132 = smul.addr %s131, 4
          %s133 = scalar_lea.vmem %s0, %s132
          %s134 = smul.u32 2, %s19
        $region24: #{tpu_custom_call.1} parent=19 // pred_fallthru
          _
      $region20: #{tpu_custom_call.1} parent=5 // pred_fallthru
        _
      %p135 = scmp.le.s32.totalorder 1, %s11
      %p136 = scmp.lt.s32.totalorder %s11, 3
      %p137 = pnand %p135, %p136
      %p138 = pneg %p137
      // Predicated region
      $region25: #{tpu_custom_call.1} parent=5 // pred_check
        _
      $region26: #{tpu_custom_call.1} parent=5 // pred_check_branch
        %140 = sbr.rel (%p137) target = $region28
      $region27: #{tpu_custom_call.1} parent=5 // pred_region
        %s141 = ssub.s32 %s11, 1
        %s142 = smul.u32 2, %s21
        %p143 = scmp.lt.s32.totalorder %s20, 1
        %s144 = scalar_select %p143, %s20, 1
        %p145 = scmp.lt.s32.totalorder %s142, 1
        %s146 = scalar_select %p145, %s142, 1
        %s147 = smul.addr %s144, 2
        %s148 = sadd.s32 %s146, %s147
        %s149 = smul.addr %s148, 4
        %s150 = scalar_lea.vmem %s0, %s149
        %p151 = pneg %p51
        %p152 = pneg %p48
        %p153 = pneg %p72
        %p154 = pneg %p69
        %p155 = pneg %p100
        %p156 = pneg %p97
        %s157 = sand.u32 %s87, 1
        %s158 = scalar_lea.sflag [#allocation3], %s157
        %s159 = sand.u32 %s87, 1
        %s160 = smul.addr %s159, 32
        %s161 = scalar_lea.vmem [#allocation2], %s160
        %s162 = smul.u32 2, %s21
        %p163 = scmp.lt.s32.totalorder %s20, 1
        %s164 = scalar_select %p163, %s20, 1
        %p165 = scmp.lt.s32.totalorder %s162, 1
        %s166 = scalar_select %p165, %s162, 1
        %s167 = smul.addr %s164, 2
        %s168 = sadd.s32 %s166, %s167
        %s169 = smul.addr %s168, 4
        %s170 = scalar_lea.vmem %s0, %s169
        %s171 = smul.u32 2, %s21
        %s172 = smul.u32 2, %s21
        %v173 = vld [vmem:[%s170] sm:$0x77]
        %v175 = vrot.slane %v173, 7
        %v177 = vsub.f32 %v173, %v175
        %vm178 = vcmp.gt.f32.partialorder %v177, 0.0392
        %v179 = vsel %vm178, 1.2998047, 1.0
        %v181 = vlaneseq
        %v182 = vshrl.u32 %v181, 7
        %v183 = vsub.s32 1, %v182
        %v184 = vrot.slane %v179, %v183
        %v185 = vlaneseq
        %v186 = vshrl.u32 %v185, 7
        %v187 = vsub.s32 5, %v186
        %v188 = vrot.slane %v179, %v187
        %v191 = vlaneseq
        %v192 = vshrl.u32 %v191, 7
        %v193 = vsub.s32 1, %v192
        %v194 = vrot.slane %v184, %v193
        %v195 = vlaneseq
        %v196 = vshrl.u32 %v195, 7
        %v197 = vsub.s32 1, %v196
        %v198 = vrot.slane %v188, %v197
        %v201 = vcombine.low %v194, %v198
        %v203 = vmul.f32 %v173, %v201
        %v204 = vld [vmem:[%s1] sm:$0xff]
        %v205 = vld [vmem:[%s1 + $0x8] sm:$0xff]
        %207 = vset.pattern.permute.xlu0 0
        %208 = vperm.xlu0 %207, %v204
        %v209 = vpop.permute.xlu0 %208
        %212 = vset.pattern.permute.xlu0 0
        %213 = vperm.xlu0 %212, %v205
        %v214 = vpop.permute.xlu0 %213
        %v217 = vlaneseq
        %v218 = vshrl.u32 %v217, 7
        %v219 = vsub.s32 0, %v218
        %v220 = vrot.slane %v203, %v219
        %v221 = vlaneseq
        %v222 = vshrl.u32 %v221, 7
        %v223 = vsub.s32 4, %v222
        %v224 = vrot.slane %v203, %v223
        %v227 = vlaneseq
        %v228 = vshrl.u32 %v227, 7
        %v229 = vsub.s32 0, %v228
        %v230 = vrot.slane %v220, %v229
        %v231 = vlaneseq
        %v232 = vshrl.u32 %v231, 7
        %v233 = vsub.s32 0, %v232
        %v234 = vrot.slane %v224, %v233
        %v235 = vmul.f32 %v209, %v230
        %v236 = vmul.f32 %v209, %v234
        %v237 = vmul.f32 %v214, %v230
        %v238 = vmul.f32 %v214, %v234
        %239 = vset.pattern.permute.xlu0 1
        %240 = vperm.xlu0 %239, %v204
        %v241 = vpop.permute.xlu0 %240
        %243 = vset.pattern.permute.xlu0 1
        %244 = vperm.xlu0 %243, %v205
        %v245 = vpop.permute.xlu0 %244
        %v247 = vlaneseq
        %v248 = vshrl.u32 %v247, 7
        %v249 = vsub.s32 1, %v248
        %v250 = vrot.slane %v203, %v249
        %v251 = vlaneseq
        %v252 = vshrl.u32 %v251, 7
        %v253 = vsub.s32 5, %v252
        %v254 = vrot.slane %v203, %v253
        %v257 = vlaneseq
        %v258 = vshrl.u32 %v257, 7
        %v259 = vsub.s32 1, %v258
        %v260 = vrot.slane %v250, %v259
        %v261 = vlaneseq
        %v262 = vshrl.u32 %v261, 7
        %v263 = vsub.s32 1, %v262
        %v264 = vrot.slane %v254, %v263
        %v265 = vmul.f32 %v241, %v260
        %v266 = vmul.f32 %v241, %v264
        %v267 = vmul.f32 %v245, %v260
        %v268 = vmul.f32 %v245, %v264
        %v269 = vadd.f32 %v235, %v265
        %v270 = vadd.f32 %v236, %v266
        %v271 = vadd.f32 %v237, %v267
        %v272 = vadd.f32 %v238, %v268
        %273 = vset.pattern.permute.xlu0 2
        %274 = vperm.xlu0 %273, %v204
        %v275 = vpop.permute.xlu0 %274
        %277 = vset.pattern.permute.xlu0 2
        %278 = vperm.xlu0 %277, %v205
        %v279 = vpop.permute.xlu0 %278
        %v281 = vlaneseq
        %v282 = vshrl.u32 %v281, 7
        %v283 = vsub.s32 2, %v282
        %v284 = vrot.slane %v203, %v283
        %v285 = vlaneseq
        %v286 = vshrl.u32 %v285, 7
        %v287 = vsub.s32 6, %v286
        %v288 = vrot.slane %v203, %v287
        %v291 = vlaneseq
        %v292 = vshrl.u32 %v291, 7
        %v293 = vsub.s32 2, %v292
        %v294 = vrot.slane %v284, %v293
        %v295 = vlaneseq
        %v296 = vshrl.u32 %v295, 7
        %v297 = vsub.s32 2, %v296
        %v298 = vrot.slane %v288, %v297
        %v299 = vmul.f32 %v275, %v294
        %v300 = vmul.f32 %v275, %v298
        %v301 = vmul.f32 %v279, %v294
        %v302 = vmul.f32 %v279, %v298
        %v303 = vadd.f32 %v269, %v299
        %v304 = vadd.f32 %v270, %v300
        %v305 = vadd.f32 %v271, %v301
        %v306 = vadd.f32 %v272, %v302
        %307 = vset.pattern.permute.xlu0 3
        %308 = vperm.xlu0 %307, %v204
        %v309 = vpop.permute.xlu0 %308
        %311 = vset.pattern.permute.xlu0 3
        %312 = vperm.xlu0 %311, %v205
        %v313 = vpop.permute.xlu0 %312
        %v315 = vadd.f32 %v303, %v309
        %v316 = vadd.f32 %v304, %v309
        %v317 = vadd.f32 %v305, %v313
        %v318 = vadd.f32 %v306, %v313
        %v319 = vmul.f32 %v315, 0.5
        %v320 = vmul.f32 %v316, 0.5
        %v321 = vmul.f32 %v317, 0.5
        %v322 = vmul.f32 %v318, 0.5
        %v323 = vtanh.pop %v319
        %v324 = vtanh.pop %v320
        %v325 = vtanh.pop %v321
        %v326 = vtanh.pop %v322
        %v327 = vmul.f32 %v323, 0.5
        %v328 = vmul.f32 %v324, 0.5
        %v329 = vmul.f32 %v325, 0.5
        %v330 = vmul.f32 %v326, 0.5
        %v331 = vadd.f32 %v327, 0.5
        %v332 = vadd.f32 %v328, 0.5
        %v333 = vadd.f32 %v329, 0.5
        %v334 = vadd.f32 %v330, 0.5
        %v335 = vmul.f32 %v315, %v331
        %v336 = vmul.f32 %v316, %v332
        %v337 = vmul.f32 %v317, %v333
        %v338 = vmul.f32 %v318, %v334
        %339 = vst [vmem:[%s161] sm:$0xff] %v335
        %340 = vst [vmem:[%s161 + $0x8] sm:$0xff] %v336
        %341 = vst [vmem:[%s161 + $0x10] sm:$0xff] %v337
        %342 = vst [vmem:[%s161 + $0x18] sm:$0xff] %v338
        %s343 = sand.u32 %s87, 1
        %s344 = scalar_lea.sflag [#allocation3], %s343
        %s345 = sand.u32 %s87, 1
        %s346 = smul.addr %s345, 32
        %s347 = scalar_lea.vmem [#allocation2], %s346
        // Predicated region
        $region29: #{tpu_custom_call.1} parent=27 // pred_check
          %p348 = pneg %p97
        $region30: #{tpu_custom_call.1} parent=27 // pred_check_branch
          %350 = sbr.rel (%p348) target = $region32
        $region31: #{tpu_custom_call.1} parent=27 // pred_region
          %s351 = smul.u32 2, %s21
          %s353 = ssub.s32 512, 512
          %354 = vsyncadd %s344, %s353
          %s355 = smul.addr %s20, 4
          %s356 = sadd.s32 %s351, %s355
          %s357 = smul.addr %s356, 128
          %s358 = scalar_lea.hbm %s2, %s357
          %s359 = sshll.u32 %s347, 4
          %s360 = int_to_ptr.vmem [resolvable:$true] %s359
          %365 = dma.vmem_to_hbm [thread:$0]  %s360, 512, %s358, %s344, 256, 256, 16
        $region32: #{tpu_custom_call.1} parent=27 // pred_fallthru
          _
      $region28: #{tpu_custom_call.1} parent=5 // pred_fallthru
        _
      %p366 = scmp.le.s32.totalorder 2, %s11
      // Predicated region
      $region33: #{tpu_custom_call.1} parent=5 // pred_check
        %p367 = pneg %p366
      $region34: #{tpu_custom_call.1} parent=5 // pred_check_branch
        %369 = sbr.rel (%p367) target = $region36
      $region35: #{tpu_custom_call.1} parent=5 // pred_region
        %s370 = ssub.s32 %s11, 2
        // Predicated region
        $region37: #{tpu_custom_call.1} parent=35 // pred_check
          %p371 = pneg %p103
        $region38: #{tpu_custom_call.1} parent=35 // pred_check_branch
          %373 = sbr.rel (%p371) target = $region40
        $region39: #{tpu_custom_call.1} parent=35 // pred_region
          %s374 = sand.u32 %s88, 1
          %s375 = scalar_lea.sflag [#allocation3], %s374
          %s376 = sand.u32 %s88, 1
          %s377 = smul.addr %s376, 32
          %s378 = scalar_lea.vmem [#allocation2], %s377
          %379 = dma.done %s375, 512
        $region40: #{tpu_custom_call.1} parent=35 // pred_fallthru
          _
      $region36: #{tpu_custom_call.1} parent=5 // pred_fallthru
        _
    $region6: #{tpu_custom_call.1} parent=1 // loop_footer
      %s15 = sadd.s32 1, %s11
    $region7: #{tpu_custom_call.1} parent=1 // loop_footer_branch
      %10 = sbr.rel target = $region3
    $region8: #{tpu_custom_call.1} parent=1 // loop_exit
      _
    %380 = vsyncpa [#allocation3], 1
    %s381 = scalar_lea.sflag [#allocation3], 1
    %382 = vsyncpa %s381, 1

</llo_original>
